<compile_context>
chip_gen: v7x
topology: tpu7x:2x2x1
jax: 0.10.0
libtpu: 0.0.40
codegen_flags: <defaults>
</compile_context>

<pallas_src>
import jax
import jax.numpy as jnp
from jax import lax
from jax.experimental import pallas as pl
from jax.experimental.pallas import tpu as pltpu

# True model dims (from the PyTorch module)
IN_DIM = 2
HID_DIM = 200
OUT_DIM = 3

# Padded, TPU-aligned internal dims
HID_PAD = 256     # 200 -> 256 (multiple of 128 lanes)
OUT_PAD = 128     # internal lane width for the MXU matmul / softmax

# ~3.5 MiB of per-block intermediates at 2048 rows -> fits every generation's
# scoped-VMEM default (16 MiB on v5e) without raising vmem_limit_bytes.
MAX_BATCH_BLOCK = 2048


def policy_kernel(x_ref, w1_ref, b1_ref, w2_ref, b2_ref, o_ref):
    # x_ref:  [B_BLK, 2]          (true K, no padding)
    # w1_ref: [2, HID_PAD]        b1_ref: [1, HID_PAD]
    # w2_ref: [HID_PAD, OUT_PAD]  b2_ref: [1, OUT_PAD]
    # o_ref:  [B_BLK, OUT_DIM]    (narrow store: only real classes hit HBM)
    x = x_ref[...]

    # affine1 + ReLU as two broadcast-FMAs on the VPU (K is really 2 — skip
    # the MXU entirely and leave it free for the second matmul).
    h = (x[:, 0:1] * w1_ref[0:1, :]
         + x[:, 1:2] * w1_ref[1:2, :]
         + b1_ref[...])
    h = jnp.maximum(h, 0.0)

    # affine2 on the MXU (padded hidden rows of w2 are zero, so they are inert).
    logits = jnp.dot(h, w2_ref[...],
                     preferred_element_type=jnp.float32,
                     precision=lax.Precision.HIGHEST) + b2_ref[...]

    # Mask padded output columns so they contribute nothing to the softmax.
    col = lax.broadcasted_iota(jnp.int32, logits.shape, 1)
    logits = jnp.where(col < OUT_DIM, logits, -jnp.inf)

    # Numerically-stable softmax over the last dim.
    m = jnp.max(logits, axis=-1, keepdims=True)
    e = jnp.exp(logits - m)
    denom = jnp.sum(e, axis=-1, keepdims=True)
    r = pl.reciprocal(denom, approx=True)     # EUP vrcp (free slot)
    r = r * (2.0 - denom * r)                 # one Newton step -> ~f32 precision

    # Store only the 3 real class columns (lane-masked vst, ~43x less HBM write).
    o_ref[...] = (e * r)[:, :OUT_DIM]


def pad_params(w1, b1, w2, b2):
    """Pad weights once at init; keep these cached across calls.

    w1: [2, 200], b1: [200], w2: [200, 3], b2: [3]  (already [in, out] layout).
    """
    w1_p = jnp.zeros((IN_DIM, HID_PAD), jnp.float32).at[:, :HID_DIM].set(w1)
    b1_p = jnp.zeros((1, HID_PAD), jnp.float32).at[0, :HID_DIM].set(b1)
    w2_p = jnp.zeros((HID_PAD, OUT_PAD), jnp.float32).at[:HID_DIM, :OUT_DIM].set(w2)
    b2_p = jnp.zeros((1, OUT_PAD), jnp.float32).at[0, :OUT_DIM].set(b2)
    return w1_p, b1_p, w2_p, b2_p


def _choose_block(batch):
    """Static (trace-time) batch block selection."""
    b_round = max(8, ((batch + 7) // 8) * 8)
    if b_round <= 256:
        # Tiny batch: single block; the call is latency-bound anyway.
        return b_round
    # Medium/large batch: at least 2 grid steps so v7x's two TensorCores both
    # get work; cap the block to amortize step overhead without VMEM pressure.
    half = ((pl.cdiv(b_round, 2) + 7) // 8) * 8
    return min(MAX_BATCH_BLOCK, half)


@jax.jit
def policy_forward(x, w1_p, b1_p, w2_p, b2_p):
    """x: [B, 2] f32; padded params from pad_params().  Returns [B, 3] probs."""
    B = x.shape[0]
    b_blk = _choose_block(B)
    grid = (pl.cdiv(B, b_blk),)

    return pl.pallas_call(
        policy_kernel,
        out_shape=jax.ShapeDtypeStruct((B, OUT_DIM), jnp.float32),
        grid=grid,
        in_specs=[
            pl.BlockSpec((b_blk, IN_DIM), lambda i: (i, 0)),     # x: tiled on batch
            pl.BlockSpec((IN_DIM, HID_PAD), lambda i: (0, 0)),   # w1: VMEM-resident
            pl.BlockSpec((1, HID_PAD), lambda i: (0, 0)),        # b1
            pl.BlockSpec((HID_PAD, OUT_PAD), lambda i: (0, 0)),  # w2
            pl.BlockSpec((1, OUT_PAD), lambda i: (0, 0)),        # b2
        ],
        out_specs=pl.BlockSpec((b_blk, OUT_DIM), lambda i: (i, 0)),
        compiler_params=pltpu.CompilerParams(
            dimension_semantics=("parallel",)),
    )(x, w1_p, b1_p, w2_p, b2_p)


def _init_params(key):
    # Deterministic init mirroring nn.Linear's U(-1/sqrt(fan_in), 1/sqrt(fan_in)).
    k1, k2, k3, k4 = jax.random.split(key, 4)
    lim1 = 1.0 / jnp.sqrt(jnp.float32(IN_DIM))
    lim2 = 1.0 / jnp.sqrt(jnp.float32(HID_DIM))
    w1 = jax.random.uniform(k1, (IN_DIM, HID_DIM), jnp.float32, -lim1, lim1)
    b1 = jax.random.uniform(k2, (HID_DIM,), jnp.float32, -lim1, lim1)
    w2 = jax.random.uniform(k3, (HID_DIM, OUT_DIM), jnp.float32, -lim2, lim2)
    b2 = jax.random.uniform(k4, (OUT_DIM,), jnp.float32, -lim2, lim2)
    return w1, b1, w2, b2


def _reference(x, w1, b1, w2, b2):
    # True-f32 reference (same precision as the kernel's HIGHEST-precision dot).
    h = jnp.maximum(jnp.dot(x, w1, precision=lax.Precision.HIGHEST) + b1, 0.0)
    logits = jnp.dot(h, w2, precision=lax.Precision.HIGHEST) + b2
    return jax.nn.softmax(logits, axis=-1)


if __name__ == "__main__":
    key = jax.random.PRNGKey(0)
    kx, kx2, kp = jax.random.split(key, 3)

    w1, b1, w2, b2 = _init_params(kp)
    padded = pad_params(w1, b1, w2, b2)   # padded ONCE, reused across calls

    # Small batch (single grid step).
    batch = 8
    x = jax.random.normal(kx, (batch, IN_DIM), jnp.float32)
    out = jax.block_until_ready(policy_forward(x, *padded))
    ref = _reference(x, w1, b1, w2, b2)
    assert out.shape == (batch, OUT_DIM)
    assert jnp.allclose(out, ref, atol=1e-5, rtol=1e-5)
    assert jnp.allclose(jnp.sum(out, axis=-1), 1.0, atol=1e-5)

    # Larger batch exercising the multi-block parallel grid + ragged last block.
    batch2 = 600
    x2 = jax.random.normal(kx2, (batch2, IN_DIM), jnp.float32)
    out2 = jax.block_until_ready(policy_forward(x2, *padded))
    ref2 = _reference(x2, w1, b1, w2, b2)
    assert out2.shape == (batch2, OUT_DIM)
    assert jnp.allclose(out2, ref2, atol=1e-5, rtol=1e-5)
    assert jnp.allclose(jnp.sum(out2, axis=-1), 1.0, atol=1e-5)

    print("KERNEL_OK")
</pallas_src>

<mosaic_0001>
module attributes {stable_mosaic.version = 11 : i64} {
  func.func @policy_kernel(%arg0: i32, %arg1: memref<8x2xf32, #tpu.memory_space<vmem>>, %arg2: memref<2x256xf32, #tpu.memory_space<vmem>>, %arg3: memref<1x256xf32, #tpu.memory_space<vmem>>, %arg4: memref<256x128xf32, #tpu.memory_space<vmem>>, %arg5: memref<1x128xf32, #tpu.memory_space<vmem>>, %arg6: memref<8x3xf32, #tpu.memory_space<vmem>>) attributes {dimension_semantics = [#tpu.dimension_semantics<parallel>], iteration_bounds = array<i64: 1>, scalar_prefetch = 0 : i64, scratch_operands = 0 : i64, tpu.core_type = #tpu.core_type<tc>, window_params = [{transform_indices = @transform_0, window_bounds = array<i64: 8, 2>}, {pipeline_mode = #tpu.pipeline_mode<synchronous>, transform_indices = @transform_1, window_bounds = array<i64: 2, 256>}, {pipeline_mode = #tpu.pipeline_mode<synchronous>, transform_indices = @transform_2, window_bounds = array<i64: 1, 256>}, {pipeline_mode = #tpu.pipeline_mode<synchronous>, transform_indices = @transform_3, window_bounds = array<i64: 256, 128>}, {pipeline_mode = #tpu.pipeline_mode<synchronous>, transform_indices = @transform_4, window_bounds = array<i64: 1, 128>}, {transform_indices = @transform_5, window_bounds = array<i64: 8, 3>}]} {
    %c0 = arith.constant 0 : index
    %c0_0 = arith.constant 0 : index
    %0 = vector.load %arg1[%c0, %c0_0] : memref<8x2xf32, #tpu.memory_space<vmem>>, vector<8x2xf32>
    %1 = vector.extract_strided_slice %0 {offsets = [0, 0], sizes = [8, 1], strides = [1, 1]} : vector<8x2xf32> to vector<8x1xf32>
    %c0_1 = arith.constant 0 : index
    %c0_2 = arith.constant 0 : index
    %2 = vector.load %arg2[%c0_1, %c0_2] : memref<2x256xf32, #tpu.memory_space<vmem>>, vector<1x256xf32>
    %3 = vector.broadcast %1 : vector<8x1xf32> to vector<8x256xf32>
    %4 = vector.broadcast %2 : vector<1x256xf32> to vector<8x256xf32>
    %5 = arith.mulf %3, %4 : vector<8x256xf32>
    %6 = vector.extract_strided_slice %0 {offsets = [0, 1], sizes = [8, 1], strides = [1, 1]} : vector<8x2xf32> to vector<8x1xf32>
    %c1 = arith.constant 1 : index
    %c0_3 = arith.constant 0 : index
    %7 = vector.load %arg2[%c1, %c0_3] : memref<2x256xf32, #tpu.memory_space<vmem>>, vector<1x256xf32>
    %8 = vector.broadcast %6 : vector<8x1xf32> to vector<8x256xf32>
    %9 = vector.broadcast %7 : vector<1x256xf32> to vector<8x256xf32>
    %10 = arith.mulf %8, %9 : vector<8x256xf32>
    %11 = arith.addf %5, %10 : vector<8x256xf32>
    %c0_4 = arith.constant 0 : index
    %c0_5 = arith.constant 0 : index
    %12 = vector.load %arg3[%c0_4, %c0_5] : memref<1x256xf32, #tpu.memory_space<vmem>>, vector<1x256xf32>
    %13 = vector.broadcast %12 : vector<1x256xf32> to vector<8x256xf32>
    %14 = arith.addf %11, %13 : vector<8x256xf32>
    %cst = arith.constant 0.000000e+00 : f32
    %15 = vector.broadcast %cst : f32 to vector<8x256xf32>
    %16 = arith.maximumf %14, %15 : vector<8x256xf32>
    %c0_6 = arith.constant 0 : index
    %c0_7 = arith.constant 0 : index
    %17 = vector.load %arg4[%c0_6, %c0_7] : memref<256x128xf32, #tpu.memory_space<vmem>>, vector<256x128xf32>
    %cst_8 = arith.constant dense<0.000000e+00> : vector<8x128xf32>
    %18 = tpu.matmul %16, %17, %cst_8 {dimension_numbers = #tpu.dot_dimension_numbers<[1], [0], [0], [1], [0, 0, 1, 1], [], []>, precision = #tpu.contract_precision<fp32>} : vector<8x256xf32>, vector<256x128xf32>, vector<8x128xf32> -> vector<8x128xf32>
    %c0_9 = arith.constant 0 : index
    %c0_10 = arith.constant 0 : index
    %19 = vector.load %arg5[%c0_9, %c0_10] : memref<1x128xf32, #tpu.memory_space<vmem>>, vector<1x128xf32>
    %20 = vector.broadcast %19 : vector<1x128xf32> to vector<8x128xf32>
    %21 = arith.addf %18, %20 : vector<8x128xf32>
    %22 = tpu.iota {dimensions = array<i32: 1>} : vector<8x128xi32>
    %c3_i32 = arith.constant 3 : i32
    %23 = vector.broadcast %c3_i32 : i32 to vector<8x128xi32>
    %24 = arith.cmpi slt, %22, %23 : vector<8x128xi32>
    %cst_11 = arith.constant 0xFF800000 : f32
    %25 = vector.broadcast %cst_11 : f32 to vector<8x128xf32>
    %26 = arith.select %24, %21, %25 : vector<8x128xi1>, vector<8x128xf32>
    %cst_12 = arith.constant dense<0xFF800000> : vector<8xf32>
    %27 = vector.multi_reduction <maximumf>, %26, %cst_12 [1] : vector<8x128xf32> to vector<8xf32>
    %28 = vector.shape_cast %27 : vector<8xf32> to vector<8x1xf32>
    %29 = vector.broadcast %28 : vector<8x1xf32> to vector<8x128xf32>
    %30 = arith.subf %26, %29 : vector<8x128xf32>
    %31 = math.exp %30 : vector<8x128xf32>
    %cst_13 = arith.constant dense<0.000000e+00> : vector<8xf32>
    %32 = vector.multi_reduction <add>, %31, %cst_13 [1] : vector<8x128xf32> to vector<8xf32>
    %33 = vector.shape_cast %32 : vector<8xf32> to vector<8x1xf32>
    %34 = tpu.reciprocal %33 {approx = true} : vector<8x1xf32> -> vector<8x1xf32>
    %35 = arith.mulf %33, %34 : vector<8x1xf32>
    %cst_14 = arith.constant 2.000000e+00 : f32
    %36 = vector.broadcast %cst_14 : f32 to vector<8x1xf32>
    %37 = arith.subf %36, %35 : vector<8x1xf32>
    %38 = arith.mulf %34, %37 : vector<8x1xf32>
    %39 = vector.broadcast %38 : vector<8x1xf32> to vector<8x128xf32>
    %40 = arith.mulf %31, %39 : vector<8x128xf32>
    %41 = vector.extract_strided_slice %40 {offsets = [0, 0], sizes = [8, 3], strides = [1, 1]} : vector<8x128xf32> to vector<8x3xf32>
    %c0_15 = arith.constant 0 : index
    %c0_16 = arith.constant 0 : index
    %42 = vector.load %arg6[%c0_15, %c0_16] : memref<8x3xf32, #tpu.memory_space<vmem>>, vector<8x3xf32>
    tpu.vector_store %arg6[%c0_15, %c0_16], %41 {strides = array<i32>} : memref<8x3xf32, #tpu.memory_space<vmem>>, vector<8x3xf32>,
    return
  }
  func.func @transform_0(%arg0: i32) -> (i32, i32) {
    %c0_i32 = arith.constant 0 : i32
    %c0_i32_0 = arith.constant 0 : i32
    return %arg0, %c0_i32 : i32, i32
  }
  func.func @transform_1(%arg0: i32) -> (i32, i32) {
    %c0_i32 = arith.constant 0 : i32
    %c0_i32_0 = arith.constant 0 : i32
    %c0_i32_1 = arith.constant 0 : i32
    return %c0_i32, %c0_i32_0 : i32, i32
  }
  func.func @transform_2(%arg0: i32) -> (i32, i32) {
    %c0_i32 = arith.constant 0 : i32
    %c0_i32_0 = arith.constant 0 : i32
    %c0_i32_1 = arith.constant 0 : i32
    return %c0_i32, %c0_i32_0 : i32, i32
  }
  func.func @transform_3(%arg0: i32) -> (i32, i32) {
    %c0_i32 = arith.constant 0 : i32
    %c0_i32_0 = arith.constant 0 : i32
    %c0_i32_1 = arith.constant 0 : i32
    return %c0_i32, %c0_i32_0 : i32, i32
  }
  func.func @transform_4(%arg0: i32) -> (i32, i32) {
    %c0_i32 = arith.constant 0 : i32
    %c0_i32_0 = arith.constant 0 : i32
    %c0_i32_1 = arith.constant 0 : i32
    return %c0_i32, %c0_i32_0 : i32, i32
  }
  func.func @transform_5(%arg0: i32) -> (i32, i32) {
    %c0_i32 = arith.constant 0 : i32
    %c0_i32_0 = arith.constant 0 : i32
    return %arg0, %c0_i32 : i32, i32
  }
}

</mosaic_0001>

<llo_original>
// kernel: policy_forward.1
$region0: #{policy_forward.1}
  #allocation0 [shape = 'u32[]', space=smem, size = 0x4, offset = 0x4, fixed_abs, tag = 'smem constant byte address 0x4 - core index']
  #allocation1 [shape = 'u32[144,128]{1,0:T(1,128)}', space=vmem, size = 0x12000, scoped, tag = 'internal scratch']
  %s0 = inlined_call_operand.vmem [shape: f32[8,2], index: 0, kind: input, shape index: {}]
  %s1 = inlined_call_operand.vmem [shape: f32[2,256], index: 1, kind: input, shape index: {}]
  %s2 = inlined_call_operand.vmem [shape: f32[1,256], index: 2, kind: input, shape index: {}]
  %s3 = inlined_call_operand.hbm [shape: f32[256,128], index: 3, kind: input, shape index: {}]
  %s4 = inlined_call_operand.vmem [shape: f32[1,128], index: 4, kind: input, shape index: {}]
  %s5 = inlined_call_operand.vmem [shape: f32[8,3], index: 5, kind: output, shape index: {}]
  %s6 = sld [smem:[#allocation0]]
  $region34: #{policy_forward.1} parent=0
    _
  %s8 = ssub.s32 1, %s6
  %s9 = scalar_select 0, %s8, %s6
  $region1: #{policy_forward.1} parent=0
    #allocation2 [shape = 'u8[131072]{0}', space=vmem, size = 0x20000, scoped, tag = 'input window, operand 3, single buffered']
    #allocation3 [shape = 's32[1]{0}', space=sflag, size = 0x4, scoped, tag = 'scoped memory for policy_forward.1']
    %10 = vsyncpa [#allocation3], 0
    // Predicated region
    $region2: #{policy_forward.1} parent=1 // pred_check
      _
    $region3: #{policy_forward.1} parent=1 // pred_check_branch
      %12 = sbr.rel (0) target = $region5
    $region4: #{policy_forward.1} parent=1 // pred_region
      _
    $region5: #{policy_forward.1} parent=1 // pred_fallthru
      _
    // Predicated region
    $region6: #{policy_forward.1} parent=1 // pred_check
      _
    $region7: #{policy_forward.1} parent=1 // pred_check_branch
      %14 = sbr.rel (0) target = $region9
    $region8: #{policy_forward.1} parent=1 // pred_region
      _
    $region9: #{policy_forward.1} parent=1 // pred_fallthru
      _
    // Predicated region
    $region10: #{policy_forward.1} parent=1 // pred_check
      _
    $region11: #{policy_forward.1} parent=1 // pred_check_branch
      %16 = sbr.rel (0) target = $region13
    $region12: #{policy_forward.1} parent=1 // pred_region
      _
    $region13: #{policy_forward.1} parent=1 // pred_fallthru
      _
    // Predicated region
    $region14: #{policy_forward.1} parent=1 // pred_check
      _
    $region15: #{policy_forward.1} parent=1 // pred_check_branch
      %18 = sbr.rel (0) target = $region17
    $region16: #{policy_forward.1} parent=1 // pred_region
      %s20 = ssub.s32 4096, 4096
      %21 = vsyncadd [#allocation3], %s20
      %s22 = sshll.u32 [#allocation2], 4
      %s23 = int_to_ptr.vmem [resolvable:$true] %s22
      %28 = dma.hbm_to_vmem [thread:$0]  %s3, 4096, %s23, [#allocation3], 128, 128, 8
    $region17: #{policy_forward.1} parent=1 // pred_fallthru
      _
    // Predicated region
    $region18: #{policy_forward.1} parent=1 // pred_check
      _
    $region19: #{policy_forward.1} parent=1 // pred_check_branch
      %30 = sbr.rel (0) target = $region21
    $region20: #{policy_forward.1} parent=1 // pred_region
      _
    $region21: #{policy_forward.1} parent=1 // pred_fallthru
      _
    // Predicated region
    $region22: #{policy_forward.1} parent=1 // pred_check
      _
    $region23: #{policy_forward.1} parent=1 // pred_check_branch
      %32 = sbr.rel (0) target = $region25
    $region24: #{policy_forward.1} parent=1 // pred_region
      %33 = dma.done [#allocation3], 4096
    $region25: #{policy_forward.1} parent=1 // pred_fallthru
      _
    %v34 = vld [vmem:[%s0] sm:$0xff]
    %v35 = vld [vmem:[%s1] ss:$2 sm:$0x3]
    %37 = vset.pattern.permute.xlu0 0
    %38 = vperm.xlu0 %37, %v34
    %v39 = vpop.permute.xlu0 %38
    %v42 = vlaneseq
    %v43 = vshrl.u32 %v42, 7
    %v44 = vsub.s32 0, %v43
    %v45 = vrot.slane %v35, %v44
    %v46 = vlaneseq
    %v47 = vshrl.u32 %v46, 7
    %v48 = vsub.s32 1, %v47
    %v49 = vrot.slane %v35, %v48
    %v52 = vmul.f32 %v39, %v45
    %v53 = vmul.f32 %v39, %v49
    %s54 = scalar_lea.vmem %s1, 1
    %v55 = vld [vmem:[%s54] ss:$2 sm:$0x3]
    %56 = vset.pattern.permute.xlu0 1
    %57 = vperm.xlu0 %56, %v34
    %v58 = vpop.permute.xlu0 %57
    %v61 = vlaneseq
    %v62 = vshrl.u32 %v61, 7
    %v63 = vsub.s32 0, %v62
    %v64 = vrot.slane %v55, %v63
    %v65 = vlaneseq
    %v66 = vshrl.u32 %v65, 7
    %v67 = vsub.s32 1, %v66
    %v68 = vrot.slane %v55, %v67
    %v71 = vmul.f32 %v58, %v64
    %v72 = vmul.f32 %v58, %v68
    %v73 = vadd.f32 %v52, %v71
    %v74 = vadd.f32 %v53, %v72
    %v75 = vld [vmem:[%s2] sm:$0x3]
    %v77 = vlaneseq
    %v78 = vshrl.u32 %v77, 7
    %v79 = vsub.s32 0, %v78
    %v80 = vrot.slane %v75, %v79
    %v81 = vlaneseq
    %v82 = vshrl.u32 %v81, 7
    %v83 = vsub.s32 1, %v82
    %v84 = vrot.slane %v75, %v83
    %v87 = vadd.f32 %v73, %v80
    %v88 = vadd.f32 %v74, %v84
    %v89 = vmax.f32 %v87, 0.0
    %v90 = vmax.f32 %v88, 0.0
    %v91 = vld [vmem:[#allocation2] sm:$0xff]
    %v92 = vld [vmem:[#allocation2 + $0x8] sm:$0xff]
    %v93 = vld [vmem:[#allocation2 + $0x10] sm:$0xff]
    %v94 = vld [vmem:[#allocation2 + $0x18] sm:$0xff]
    %v95 = vld [vmem:[#allocation2 + $0x20] sm:$0xff]
    %v96 = vld [vmem:[#allocation2 + $0x28] sm:$0xff]
    %v97 = vld [vmem:[#allocation2 + $0x30] sm:$0xff]
    %v98 = vld [vmem:[#allocation2 + $0x38] sm:$0xff]
    %v99 = vld [vmem:[#allocation2 + $0x40] sm:$0xff]
    %v100 = vld [vmem:[#allocation2 + $0x48] sm:$0xff]
    %v101 = vld [vmem:[#allocation2 + $0x50] sm:$0xff]
    %v102 = vld [vmem:[#allocation2 + $0x58] sm:$0xff]
    %v103 = vld [vmem:[#allocation2 + $0x60] sm:$0xff]
    %v104 = vld [vmem:[#allocation2 + $0x68] sm:$0xff]
    %v105 = vld [vmem:[#allocation2 + $0x70] sm:$0xff]
    %v106 = vld [vmem:[#allocation2 + $0x78] sm:$0xff]
    %v107 = vld [vmem:[#allocation2 + $0x80] sm:$0xff]
    %v108 = vld [vmem:[#allocation2 + $0x88] sm:$0xff]
    %v109 = vld [vmem:[#allocation2 + $0x90] sm:$0xff]
    %v110 = vld [vmem:[#allocation2 + $0x98] sm:$0xff]
    %v111 = vld [vmem:[#allocation2 + $0xa0] sm:$0xff]
    %v112 = vld [vmem:[#allocation2 + $0xa8] sm:$0xff]
    %v113 = vld [vmem:[#allocation2 + $0xb0] sm:$0xff]
    %v114 = vld [vmem:[#allocation2 + $0xb8] sm:$0xff]
    %v115 = vld [vmem:[#allocation2 + $0xc0] sm:$0xff]
    %v116 = vld [vmem:[#allocation2 + $0xc8] sm:$0xff]
    %v117 = vld [vmem:[#allocation2 + $0xd0] sm:$0xff]
    %v118 = vld [vmem:[#allocation2 + $0xd8] sm:$0xff]
    %v119 = vld [vmem:[#allocation2 + $0xe0] sm:$0xff]
    %v120 = vld [vmem:[#allocation2 + $0xe8] sm:$0xff]
    %v121 = vld [vmem:[#allocation2 + $0xf0] sm:$0xff]
    %v122 = vld [vmem:[#allocation2 + $0xf8] sm:$0xff]
    %v123 = vld [vmem:[%s4] sm:$0x1]
    %v125 = vlaneseq
    %v126 = vshrl.u32 %v125, 7
    %v127 = vsub.s32 0, %v126
    %v128 = vrot.slane %v123, %v127
    %130 = vmatprep.subr.mxu0 0.0
    %v131 = vand.u32 %v91, 4294901760
    %132 = vmatpush1.msra.mxu0 %v131
    %133 = vmatprep.subr.mxu0 0.0
    %v134 = vand.u32 %v92, 4294901760
    %135 = vmatpush1.msra.mxu0 %v134
    %136 = vmatprep.subr.mxu0 0.0
    %v137 = vand.u32 %v93, 4294901760
    %138 = vmatpush1.msra.mxu0 %v137
    %139 = vmatprep.subr.mxu0 0.0
    %v140 = vand.u32 %v94, 4294901760
    %141 = vmatpush1.msra.mxu0 %v140
    %142 = vmatprep.subr.mxu0 0.0
    %v143 = vand.u32 %v95, 4294901760
    %144 = vmatpush1.msra.mxu0 %v143
    %145 = vmatprep.subr.mxu0 0.0
    %v146 = vand.u32 %v96, 4294901760
    %147 = vmatpush1.msra.mxu0 %v146
    %148 = vmatprep.subr.mxu0 0.0
    %v149 = vand.u32 %v97, 4294901760
    %150 = vmatpush1.msra.mxu0 %v149
    %151 = vmatprep.subr.mxu0 0.0
    %v152 = vand.u32 %v98, 4294901760
    %153 = vmatpush1.msra.mxu0 %v152
    %154 = vmatprep.subr.mxu0 0.0
    %v155 = vand.u32 %v99, 4294901760
    %156 = vmatpush1.msra.mxu0 %v155
    %157 = vmatprep.subr.mxu0 0.0
    %v158 = vand.u32 %v100, 4294901760
    %159 = vmatpush1.msra.mxu0 %v158
    %160 = vmatprep.subr.mxu0 0.0
    %v161 = vand.u32 %v101, 4294901760
    %162 = vmatpush1.msra.mxu0 %v161
    %163 = vmatprep.subr.mxu0 0.0
    %v164 = vand.u32 %v102, 4294901760
    %165 = vmatpush1.msra.mxu0 %v164
    %166 = vmatprep.subr.mxu0 0.0
    %v167 = vand.u32 %v103, 4294901760
    %168 = vmatpush1.msra.mxu0 %v167
    %169 = vmatprep.subr.mxu0 0.0
    %v170 = vand.u32 %v104, 4294901760
    %171 = vmatpush1.msra.mxu0 %v170
    %172 = vmatprep.subr.mxu0 0.0
    %v173 = vand.u32 %v105, 4294901760
    %174 = vmatpush1.msra.mxu0 %v173
    %175 = vmatprep.subr.mxu0 0.0
    %v176 = vand.u32 %v106, 4294901760
    %177 = vmatpush1.msra.mxu0 %v176
    %178 = vmatprep.subr.mxu0 0.0
    %v179 = vand.u32 %v107, 4294901760
    %180 = vmatpush1.msra.mxu0 %v179
    %181 = vmatprep.subr.mxu0 0.0
    %v182 = vand.u32 %v108, 4294901760
    %183 = vmatpush1.msra.mxu0 %v182
    %184 = vmatprep.subr.mxu0 0.0
    %v185 = vand.u32 %v109, 4294901760
    %186 = vmatpush1.msra.mxu0 %v185
    %187 = vmatprep.subr.mxu0 0.0
    %v188 = vand.u32 %v110, 4294901760
    %189 = vmatpush1.msra.mxu0 %v188
    %190 = vmatprep.subr.mxu0 0.0
    %v191 = vand.u32 %v111, 4294901760
    %192 = vmatpush1.msra.mxu0 %v191
    %193 = vmatprep.subr.mxu0 0.0
    %v194 = vand.u32 %v112, 4294901760
    %195 = vmatpush1.msra.mxu0 %v194
    %196 = vmatprep.subr.mxu0 0.0
    %v197 = vand.u32 %v113, 4294901760
    %198 = vmatpush1.msra.mxu0 %v197
    %199 = vmatprep.subr.mxu0 0.0
    %v200 = vand.u32 %v114, 4294901760
    %201 = vmatpush1.msra.mxu0 %v200
    %202 = vmatprep.subr.mxu0 0.0
    %v203 = vand.u32 %v115, 4294901760
    %204 = vmatpush1.msra.mxu0 %v203
    %205 = vmatprep.subr.mxu0 0.0
    %v206 = vand.u32 %v116, 4294901760
    %207 = vmatpush1.msra.mxu0 %v206
    %208 = vmatprep.subr.mxu0 0.0
    %v209 = vand.u32 %v117, 4294901760
    %210 = vmatpush1.msra.mxu0 %v209
    %211 = vmatprep.subr.mxu0 0.0
    %v212 = vand.u32 %v118, 4294901760
    %213 = vmatpush1.msra.mxu0 %v212
    %214 = vmatprep.subr.mxu0 0.0
    %v215 = vand.u32 %v119, 4294901760
    %216 = vmatpush1.msra.mxu0 %v215
    %217 = vmatprep.subr.mxu0 0.0
    %v218 = vand.u32 %v120, 4294901760
    %219 = vmatpush1.msra.mxu0 %v218
    %220 = vmatprep.subr.mxu0 0.0
    %v221 = vand.u32 %v121, 4294901760
    %222 = vmatpush1.msra.mxu0 %v221
    %223 = vmatprep.subr.mxu0 0.0
    %v224 = vand.u32 %v122, 4294901760
    %225 = vmatpush1.msra.mxu0 %v224
    %v226 = vand.u32 %v90, 4294901760
    %v227 = vsub.f32 %v90, %v226
    %v228 = vand.u32 %v227, 4294901760
    %v229 = vsub.f32 %v227, %v228
    %v230 = vand.u32 %v229, 4294901760
    %231 = vmatprep.mubr.f32.mxu0 %v230
    %v232 = vand.u32 %v89, 4294901760
    %v233 = vsub.f32 %v89, %v232
    %v234 = vand.u32 %v233, 4294901760
    %v235 = vsub.f32 %v233, %v234
    %v236 = vand.u32 %v235, 4294901760
    %237 = vmatmul.mubr.f32.gmra.mrb[0].mxu0 %v236
    %v238 = vpop.f32.mrb[0].mxu0
    %v239 = vadd.f32 %v128, %v238
    %v240 = vpop.f32.mrb[0].mxu0
    %241 = vdwg.mxu0
    %242 = vmatprep.subr.mxu0 0.0
    %v243 = vand.u32 %v91, 4294901760
    %v244 = vsub.f32 %v91, %v243
    %v245 = vand.u32 %v244, 4294901760
    %v246 = vsub.f32 %v244, %v245
    %v247 = vand.u32 %v246, 4294901760
    %248 = vmatpush1.msra.mxu0 %v247
    %249 = vmatprep.subr.mxu0 0.0
    %v250 = vand.u32 %v92, 4294901760
    %v251 = vsub.f32 %v92, %v250
    %v252 = vand.u32 %v251, 4294901760
    %v253 = vsub.f32 %v251, %v252
    %v254 = vand.u32 %v253, 4294901760
    %255 = vmatpush1.msra.mxu0 %v254
    %256 = vmatprep.subr.mxu0 0.0
    %v257 = vand.u32 %v93, 4294901760
    %v258 = vsub.f32 %v93, %v257
    %v259 = vand.u32 %v258, 4294901760
    %v260 = vsub.f32 %v258, %v259
    %v261 = vand.u32 %v260, 4294901760
    %262 = vmatpush1.msra.mxu0 %v261
    %263 = vmatprep.subr.mxu0 0.0
    %v264 = vand.u32 %v94, 4294901760
    %v265 = vsub.f32 %v94, %v264
    %v266 = vand.u32 %v265, 4294901760
    %v267 = vsub.f32 %v265, %v266
    %v268 = vand.u32 %v267, 4294901760
    %269 = vmatpush1.msra.mxu0 %v268
    %270 = vmatprep.subr.mxu0 0.0
    %v271 = vand.u32 %v95, 4294901760
    %v272 = vsub.f32 %v95, %v271
    %v273 = vand.u32 %v272, 4294901760
    %v274 = vsub.f32 %v272, %v273
    %v275 = vand.u32 %v274, 4294901760
    %276 = vmatpush1.msra.mxu0 %v275
    %277 = vmatprep.subr.mxu0 0.0
    %v278 = vand.u32 %v96, 4294901760
    %v279 = vsub.f32 %v96, %v278
    %v280 = vand.u32 %v279, 4294901760
    %v281 = vsub.f32 %v279, %v280
    %v282 = vand.u32 %v281, 4294901760
    %283 = vmatpush1.msra.mxu0 %v282
    %284 = vmatprep.subr.mxu0 0.0
    %v285 = vand.u32 %v97, 4294901760
    %v286 = vsub.f32 %v97, %v285
    %v287 = vand.u32 %v286, 4294901760
    %v288 = vsub.f32 %v286, %v287
    %v289 = vand.u32 %v288, 4294901760
    %290 = vmatpush1.msra.mxu0 %v289
    %291 = vmatprep.subr.mxu0 0.0
    %v292 = vand.u32 %v98, 4294901760
    %v293 = vsub.f32 %v98, %v292
    %v294 = vand.u32 %v293, 4294901760
    %v295 = vsub.f32 %v293, %v294
    %v296 = vand.u32 %v295, 4294901760
    %297 = vmatpush1.msra.mxu0 %v296
    %298 = vmatprep.subr.mxu0 0.0
    %v299 = vand.u32 %v99, 4294901760
    %v300 = vsub.f32 %v99, %v299
    %v301 = vand.u32 %v300, 4294901760
    %v302 = vsub.f32 %v300, %v301
    %v303 = vand.u32 %v302, 4294901760
    %304 = vmatpush1.msra.mxu0 %v303
    %305 = vmatprep.subr.mxu0 0.0
    %v306 = vand.u32 %v100, 4294901760
    %v307 = vsub.f32 %v100, %v306
    %v308 = vand.u32 %v307, 4294901760
    %v309 = vsub.f32 %v307, %v308
    %v310 = vand.u32 %v309, 4294901760
    %311 = vmatpush1.msra.mxu0 %v310
    %312 = vmatprep.subr.mxu0 0.0
    %v313 = vand.u32 %v101, 4294901760
    %v314 = vsub.f32 %v101, %v313
    %v315 = vand.u32 %v314, 4294901760
    %v316 = vsub.f32 %v314, %v315
    %v317 = vand.u32 %v316, 4294901760
    %318 = vmatpush1.msra.mxu0 %v317
    %319 = vmatprep.subr.mxu0 0.0
    %v320 = vand.u32 %v102, 4294901760
    %v321 = vsub.f32 %v102, %v320
    %v322 = vand.u32 %v321, 4294901760
    %v323 = vsub.f32 %v321, %v322
    %v324 = vand.u32 %v323, 4294901760
    %325 = vmatpush1.msra.mxu0 %v324
    %326 = vmatprep.subr.mxu0 0.0
    %v327 = vand.u32 %v103, 4294901760
    %v328 = vsub.f32 %v103, %v327
    %v329 = vand.u32 %v328, 4294901760
    %v330 = vsub.f32 %v328, %v329
    %v331 = vand.u32 %v330, 4294901760
    %332 = vmatpush1.msra.mxu0 %v331
    %333 = vmatprep.subr.mxu0 0.0
    %v334 = vand.u32 %v104, 4294901760
    %v335 = vsub.f32 %v104, %v334
    %v336 = vand.u32 %v335, 4294901760
    %v337 = vsub.f32 %v335, %v336
    %v338 = vand.u32 %v337, 4294901760
    %339 = vmatpush1.msra.mxu0 %v338
    %340 = vmatprep.subr.mxu0 0.0
    %v341 = vand.u32 %v105, 4294901760
    %v342 = vsub.f32 %v105, %v341
    %v343 = vand.u32 %v342, 4294901760
    %v344 = vsub.f32 %v342, %v343
    %v345 = vand.u32 %v344, 4294901760
    %346 = vmatpush1.msra.mxu0 %v345
    %347 = vmatprep.subr.mxu0 0.0
    %v348 = vand.u32 %v106, 4294901760
    %v349 = vsub.f32 %v106, %v348
    %v350 = vand.u32 %v349, 4294901760
    %v351 = vsub.f32 %v349, %v350
    %v352 = vand.u32 %v351, 4294901760
    %353 = vmatpush1.msra.mxu0 %v352
    %354 = vmatprep.subr.mxu0 0.0
    %v355 = vand.u32 %v107, 4294901760
    %v356 = vsub.f32 %v107, %v355
    %v357 = vand.u32 %v356, 4294901760
    %v358 = vsub.f32 %v356, %v357
    %v359 = vand.u32 %v358, 4294901760
    %360 = vmatpush1.msra.mxu0 %v359
    %361 = vmatprep.subr.mxu0 0.0
    %v362 = vand.u32 %v108, 4294901760
    %v363 = vsub.f32 %v108, %v362
    %v364 = vand.u32 %v363, 4294901760
    %v365 = vsub.f32 %v363, %v364
    %v366 = vand.u32 %v365, 4294901760
    %367 = vmatpush1.msra.mxu0 %v366
    %368 = vmatprep.subr.mxu0 0.0
    %v369 = vand.u32 %v109, 4294901760
    %v370 = vsub.f32 %v109, %v369
    %v371 = vand.u32 %v370, 4294901760
    %v372 = vsub.f32 %v370, %v371
    %v373 = vand.u32 %v372, 4294901760
    %374 = vmatpush1.msra.mxu0 %v373
    %375 = vmatprep.subr.mxu0 0.0
    %v376 = vand.u32 %v110, 4294901760
    %v377 = vsub.f32 %v110, %v376
    %v378 = vand.u32 %v377, 4294901760
    %v379 = vsub.f32 %v377, %v378
    %v380 = vand.u32 %v379, 4294901760
    %381 = vmatpush1.msra.mxu0 %v380
    %382 = vmatprep.subr.mxu0 0.0
    %v383 = vand.u32 %v111, 4294901760
    %v384 = vsub.f32 %v111, %v383
    %v385 = vand.u32 %v384, 4294901760
    %v386 = vsub.f32 %v384, %v385
    %v387 = vand.u32 %v386, 4294901760
    %388 = vmatpush1.msra.mxu0 %v387
    %389 = vmatprep.subr.mxu0 0.0
    %v390 = vand.u32 %v112, 4294901760
    %v391 = vsub.f32 %v112, %v390
    %v392 = vand.u32 %v391, 4294901760
    %v393 = vsub.f32 %v391, %v392
    %v394 = vand.u32 %v393, 4294901760
    %395 = vmatpush1.msra.mxu0 %v394
    %396 = vmatprep.subr.mxu0 0.0
    %v397 = vand.u32 %v113, 4294901760
    %v398 = vsub.f32 %v113, %v397
    %v399 = vand.u32 %v398, 4294901760
    %v400 = vsub.f32 %v398, %v399
    %v401 = vand.u32 %v400, 4294901760
    %402 = vmatpush1.msra.mxu0 %v401
    %403 = vmatprep.subr.mxu0 0.0
    %v404 = vand.u32 %v114, 4294901760
    %v405 = vsub.f32 %v114, %v404
    %v406 = vand.u32 %v405, 4294901760
    %v407 = vsub.f32 %v405, %v406
    %v408 = vand.u32 %v407, 4294901760
    %409 = vmatpush1.msra.mxu0 %v408
    %410 = vmatprep.subr.mxu0 0.0
    %v411 = vand.u32 %v115, 4294901760
    %v412 = vsub.f32 %v115, %v411
    %v413 = vand.u32 %v412, 4294901760
    %v414 = vsub.f32 %v412, %v413
    %v415 = vand.u32 %v414, 4294901760
    %416 = vmatpush1.msra.mxu0 %v415
    %417 = vmatprep.subr.mxu0 0.0
    %v418 = vand.u32 %v116, 4294901760
    %v419 = vsub.f32 %v116, %v418
    %v420 = vand.u32 %v419, 4294901760
    %v421 = vsub.f32 %v419, %v420
    %v422 = vand.u32 %v421, 4294901760
    %423 = vmatpush1.msra.mxu0 %v422
    %424 = vmatprep.subr.mxu0 0.0
    %v425 = vand.u32 %v117, 4294901760
    %v426 = vsub.f32 %v117, %v425
    %v427 = vand.u32 %v426, 4294901760
    %v428 = vsub.f32 %v426, %v427
    %v429 = vand.u32 %v428, 4294901760
    %430 = vmatpush1.msra.mxu0 %v429
    %431 = vmatprep.subr.mxu0 0.0
    %v432 = vand.u32 %v118, 4294901760
    %v433 = vsub.f32 %v118, %v432
    %v434 = vand.u32 %v433, 4294901760
    %v435 = vsub.f32 %v433, %v434
    %v436 = vand.u32 %v435, 4294901760
    %437 = vmatpush1.msra.mxu0 %v436
    %438 = vmatprep.subr.mxu0 0.0
    %v439 = vand.u32 %v119, 4294901760
    %v440 = vsub.f32 %v119, %v439
    %v441 = vand.u32 %v440, 4294901760
    %v442 = vsub.f32 %v440, %v441
    %v443 = vand.u32 %v442, 4294901760
    %444 = vmatpush1.msra.mxu0 %v443
    %445 = vmatprep.subr.mxu0 0.0
    %v446 = vand.u32 %v120, 4294901760
    %v447 = vsub.f32 %v120, %v446
    %v448 = vand.u32 %v447, 4294901760
    %v449 = vsub.f32 %v447, %v448
    %v450 = vand.u32 %v449, 4294901760
    %451 = vmatpush1.msra.mxu0 %v450
    %452 = vmatprep.subr.mxu0 0.0
    %v453 = vand.u32 %v121, 4294901760
    %v454 = vsub.f32 %v121, %v453
    %v455 = vand.u32 %v454, 4294901760
    %v456 = vsub.f32 %v454, %v455
    %v457 = vand.u32 %v456, 4294901760
    %458 = vmatpush1.msra.mxu0 %v457
    %459 = vmatprep.subr.mxu0 0.0
    %v460 = vand.u32 %v122, 4294901760
    %v461 = vsub.f32 %v122, %v460
    %v462 = vand.u32 %v461, 4294901760
    %v463 = vsub.f32 %v461, %v462
    %v464 = vand.u32 %v463, 4294901760
    %465 = vmatpush1.msra.mxu0 %v464
    %v466 = vand.u32 %v90, 4294901760
    %467 = vmatprep.mubr.f32.mxu0 %v466
    %v468 = vand.u32 %v89, 4294901760
    %469 = vmatmul.mubr.f32.gmra.mrb[0].mxu0 %v468
    %v470 = vpop.f32.mrb[0].mxu0
    %v471 = vadd.f32 %v239, %v470
    %v472 = vpop.f32.mrb[0].mxu0
    %473 = vdwg.mxu0
    %474 = vmatprep.subr.mxu0 0.0
    %v475 = vand.u32 %v91, 4294901760
    %v476 = vsub.f32 %v91, %v475
    %477 = vmatpush1.msra.mxu0 %v476
    %478 = vmatprep.subr.mxu0 0.0
    %v479 = vand.u32 %v92, 4294901760
    %v480 = vsub.f32 %v92, %v479
    %481 = vmatpush1.msra.mxu0 %v480
    %482 = vmatprep.subr.mxu0 0.0
    %v483 = vand.u32 %v93, 4294901760
    %v484 = vsub.f32 %v93, %v483
    %485 = vmatpush1.msra.mxu0 %v484
    %486 = vmatprep.subr.mxu0 0.0
    %v487 = vand.u32 %v94, 4294901760
    %v488 = vsub.f32 %v94, %v487
    %489 = vmatpush1.msra.mxu0 %v488
    %490 = vmatprep.subr.mxu0 0.0
    %v491 = vand.u32 %v95, 4294901760
    %v492 = vsub.f32 %v95, %v491
    %493 = vmatpush1.msra.mxu0 %v492
    %494 = vmatprep.subr.mxu0 0.0
    %v495 = vand.u32 %v96, 4294901760
    %v496 = vsub.f32 %v96, %v495
    %497 = vmatpush1.msra.mxu0 %v496
    %498 = vmatprep.subr.mxu0 0.0
    %v499 = vand.u32 %v97, 4294901760
    %v500 = vsub.f32 %v97, %v499
    %501 = vmatpush1.msra.mxu0 %v500
    %502 = vmatprep.subr.mxu0 0.0
    %v503 = vand.u32 %v98, 4294901760
    %v504 = vsub.f32 %v98, %v503
    %505 = vmatpush1.msra.mxu0 %v504
    %506 = vmatprep.subr.mxu0 0.0
    %v507 = vand.u32 %v99, 4294901760
    %v508 = vsub.f32 %v99, %v507
    %509 = vmatpush1.msra.mxu0 %v508
    %510 = vmatprep.subr.mxu0 0.0
    %v511 = vand.u32 %v100, 4294901760
    %v512 = vsub.f32 %v100, %v511
    %513 = vmatpush1.msra.mxu0 %v512
    %514 = vmatprep.subr.mxu0 0.0
    %v515 = vand.u32 %v101, 4294901760
    %v516 = vsub.f32 %v101, %v515
    %517 = vmatpush1.msra.mxu0 %v516
    %518 = vmatprep.subr.mxu0 0.0
    %v519 = vand.u32 %v102, 4294901760
    %v520 = vsub.f32 %v102, %v519
    %521 = vmatpush1.msra.mxu0 %v520
    %522 = vmatprep.subr.mxu0 0.0
    %v523 = vand.u32 %v103, 4294901760
    %v524 = vsub.f32 %v103, %v523
    %525 = vmatpush1.msra.mxu0 %v524
    %526 = vmatprep.subr.mxu0 0.0
    %v527 = vand.u32 %v104, 4294901760
    %v528 = vsub.f32 %v104, %v527
    %529 = vmatpush1.msra.mxu0 %v528
    %530 = vmatprep.subr.mxu0 0.0
    %v531 = vand.u32 %v105, 4294901760
    %v532 = vsub.f32 %v105, %v531
    %533 = vmatpush1.msra.mxu0 %v532
    %534 = vmatprep.subr.mxu0 0.0
    %v535 = vand.u32 %v106, 4294901760
    %v536 = vsub.f32 %v106, %v535
    %537 = vmatpush1.msra.mxu0 %v536
    %538 = vmatprep.subr.mxu0 0.0
    %v539 = vand.u32 %v107, 4294901760
    %v540 = vsub.f32 %v107, %v539
    %541 = vmatpush1.msra.mxu0 %v540
    %542 = vmatprep.subr.mxu0 0.0
    %v543 = vand.u32 %v108, 4294901760
    %v544 = vsub.f32 %v108, %v543
    %545 = vmatpush1.msra.mxu0 %v544
    %546 = vmatprep.subr.mxu0 0.0
    %v547 = vand.u32 %v109, 4294901760
    %v548 = vsub.f32 %v109, %v547
    %549 = vmatpush1.msra.mxu0 %v548
    %550 = vmatprep.subr.mxu0 0.0
    %v551 = vand.u32 %v110, 4294901760
    %v552 = vsub.f32 %v110, %v551
    %553 = vmatpush1.msra.mxu0 %v552
    %554 = vmatprep.subr.mxu0 0.0
    %v555 = vand.u32 %v111, 4294901760
    %v556 = vsub.f32 %v111, %v555
    %557 = vmatpush1.msra.mxu0 %v556
    %558 = vmatprep.subr.mxu0 0.0
    %v559 = vand.u32 %v112, 4294901760
    %v560 = vsub.f32 %v112, %v559
    %561 = vmatpush1.msra.mxu0 %v560
    %562 = vmatprep.subr.mxu0 0.0
    %v563 = vand.u32 %v113, 4294901760
    %v564 = vsub.f32 %v113, %v563
    %565 = vmatpush1.msra.mxu0 %v564
    %566 = vmatprep.subr.mxu0 0.0
    %v567 = vand.u32 %v114, 4294901760
    %v568 = vsub.f32 %v114, %v567
    %569 = vmatpush1.msra.mxu0 %v568
    %570 = vmatprep.subr.mxu0 0.0
    %v571 = vand.u32 %v115, 4294901760
    %v572 = vsub.f32 %v115, %v571
    %573 = vmatpush1.msra.mxu0 %v572
    %574 = vmatprep.subr.mxu0 0.0
    %v575 = vand.u32 %v116, 4294901760
    %v576 = vsub.f32 %v116, %v575
    %577 = vmatpush1.msra.mxu0 %v576
    %578 = vmatprep.subr.mxu0 0.0
    %v579 = vand.u32 %v117, 4294901760
    %v580 = vsub.f32 %v117, %v579
    %581 = vmatpush1.msra.mxu0 %v580
    %582 = vmatprep.subr.mxu0 0.0
    %v583 = vand.u32 %v118, 4294901760
    %v584 = vsub.f32 %v118, %v583
    %585 = vmatpush1.msra.mxu0 %v584
    %586 = vmatprep.subr.mxu0 0.0
    %v587 = vand.u32 %v119, 4294901760
    %v588 = vsub.f32 %v119, %v587
    %589 = vmatpush1.msra.mxu0 %v588
    %590 = vmatprep.subr.mxu0 0.0
    %v591 = vand.u32 %v120, 4294901760
    %v592 = vsub.f32 %v120, %v591
    %593 = vmatpush1.msra.mxu0 %v592
    %594 = vmatprep.subr.mxu0 0.0
    %v595 = vand.u32 %v121, 4294901760
    %v596 = vsub.f32 %v121, %v595
    %597 = vmatpush1.msra.mxu0 %v596
    %598 = vmatprep.subr.mxu0 0.0
    %v599 = vand.u32 %v122, 4294901760
    %v600 = vsub.f32 %v122, %v599
    %601 = vmatpush1.msra.mxu0 %v600
    %v602 = vand.u32 %v90, 4294901760
    %v603 = vsub.f32 %v90, %v602
    %604 = vmatprep.mubr.f32.mxu0 %v603
    %v605 = vand.u32 %v89, 4294901760
    %v606 = vsub.f32 %v89, %v605
    %607 = vmatmul.mubr.f32.gmra.mrb[0].mxu0 %v606
    %v608 = vpop.f32.mrb[0].mxu0
    %v609 = vadd.f32 %v471, %v608
    %v610 = vpop.f32.mrb[0].mxu0
    %611 = vdwg.mxu0
    %612 = vmatprep.subr.mxu0 0.0
    %v613 = vand.u32 %v91, 4294901760
    %614 = vmatpush1.msra.mxu0 %v613
    %615 = vmatprep.subr.mxu0 0.0
    %v616 = vand.u32 %v92, 4294901760
    %617 = vmatpush1.msra.mxu0 %v616
    %618 = vmatprep.subr.mxu0 0.0
    %v619 = vand.u32 %v93, 4294901760
    %620 = vmatpush1.msra.mxu0 %v619
    %621 = vmatprep.subr.mxu0 0.0
    %v622 = vand.u32 %v94, 4294901760
    %623 = vmatpush1.msra.mxu0 %v622
    %624 = vmatprep.subr.mxu0 0.0
    %v625 = vand.u32 %v95, 4294901760
    %626 = vmatpush1.msra.mxu0 %v625
    %627 = vmatprep.subr.mxu0 0.0
    %v628 = vand.u32 %v96, 4294901760
    %629 = vmatpush1.msra.mxu0 %v628
    %630 = vmatprep.subr.mxu0 0.0
    %v631 = vand.u32 %v97, 4294901760
    %632 = vmatpush1.msra.mxu0 %v631
    %633 = vmatprep.subr.mxu0 0.0
    %v634 = vand.u32 %v98, 4294901760
    %635 = vmatpush1.msra.mxu0 %v634
    %636 = vmatprep.subr.mxu0 0.0
    %v637 = vand.u32 %v99, 4294901760
    %638 = vmatpush1.msra.mxu0 %v637
    %639 = vmatprep.subr.mxu0 0.0
    %v640 = vand.u32 %v100, 4294901760
    %641 = vmatpush1.msra.mxu0 %v640
    %642 = vmatprep.subr.mxu0 0.0
    %v643 = vand.u32 %v101, 4294901760
    %644 = vmatpush1.msra.mxu0 %v643
    %645 = vmatprep.subr.mxu0 0.0
    %v646 = vand.u32 %v102, 4294901760
    %647 = vmatpush1.msra.mxu0 %v646
    %648 = vmatprep.subr.mxu0 0.0
    %v649 = vand.u32 %v103, 4294901760
    %650 = vmatpush1.msra.mxu0 %v649
    %651 = vmatprep.subr.mxu0 0.0
    %v652 = vand.u32 %v104, 4294901760
    %653 = vmatpush1.msra.mxu0 %v652
    %654 = vmatprep.subr.mxu0 0.0
    %v655 = vand.u32 %v105, 4294901760
    %656 = vmatpush1.msra.mxu0 %v655
    %657 = vmatprep.subr.mxu0 0.0
    %v658 = vand.u32 %v106, 4294901760
    %659 = vmatpush1.msra.mxu0 %v658
    %660 = vmatprep.subr.mxu0 0.0
    %v661 = vand.u32 %v107, 4294901760
    %662 = vmatpush1.msra.mxu0 %v661
    %663 = vmatprep.subr.mxu0 0.0
    %v664 = vand.u32 %v108, 4294901760
    %665 = vmatpush1.msra.mxu0 %v664
    %666 = vmatprep.subr.mxu0 0.0
    %v667 = vand.u32 %v109, 4294901760
    %668 = vmatpush1.msra.mxu0 %v667
    %669 = vmatprep.subr.mxu0 0.0
    %v670 = vand.u32 %v110, 4294901760
    %671 = vmatpush1.msra.mxu0 %v670
    %672 = vmatprep.subr.mxu0 0.0
    %v673 = vand.u32 %v111, 4294901760
    %674 = vmatpush1.msra.mxu0 %v673
    %675 = vmatprep.subr.mxu0 0.0
    %v676 = vand.u32 %v112, 4294901760
    %677 = vmatpush1.msra.mxu0 %v676
    %678 = vmatprep.subr.mxu0 0.0
    %v679 = vand.u32 %v113, 4294901760
    %680 = vmatpush1.msra.mxu0 %v679
    %681 = vmatprep.subr.mxu0 0.0
    %v682 = vand.u32 %v114, 4294901760
    %683 = vmatpush1.msra.mxu0 %v682
    %684 = vmatprep.subr.mxu0 0.0
    %v685 = vand.u32 %v115, 4294901760
    %686 = vmatpush1.msra.mxu0 %v685
    %687 = vmatprep.subr.mxu0 0.0
    %v688 = vand.u32 %v116, 4294901760
    %689 = vmatpush1.msra.mxu0 %v688
    %690 = vmatprep.subr.mxu0 0.0
    %v691 = vand.u32 %v117, 4294901760
    %692 = vmatpush1.msra.mxu0 %v691
    %693 = vmatprep.subr.mxu0 0.0
    %v694 = vand.u32 %v118, 4294901760
    %695 = vmatpush1.msra.mxu0 %v694
    %696 = vmatprep.subr.mxu0 0.0
    %v697 = vand.u32 %v119, 4294901760
    %698 = vmatpush1.msra.mxu0 %v697
    %699 = vmatprep.subr.mxu0 0.0
    %v700 = vand.u32 %v120, 4294901760
    %701 = vmatpush1.msra.mxu0 %v700
    %702 = vmatprep.subr.mxu0 0.0
    %v703 = vand.u32 %v121, 4294901760
    %704 = vmatpush1.msra.mxu0 %v703
    %705 = vmatprep.subr.mxu0 0.0
    %v706 = vand.u32 %v122, 4294901760
    %707 = vmatpush1.msra.mxu0 %v706
    %v708 = vand.u32 %v90, 4294901760
    %v709 = vsub.f32 %v90, %v708
    %v710 = vand.u32 %v709, 4294901760
    %711 = vmatprep.mubr.f32.mxu0 %v710
    %v712 = vand.u32 %v89, 4294901760
    %v713 = vsub.f32 %v89, %v712
    %v714 = vand.u32 %v713, 4294901760
    %715 = vmatmul.mubr.f32.gmra.mrb[0].mxu0 %v714
    %v716 = vpop.f32.mrb[0].mxu0
    %v717 = vadd.f32 %v609, %v716
    %v718 = vpop.f32.mrb[0].mxu0
    %719 = vdwg.mxu0
    %720 = vmatprep.subr.mxu0 0.0
    %v721 = vand.u32 %v91, 4294901760
    %v722 = vsub.f32 %v91, %v721
    %v723 = vand.u32 %v722, 4294901760
    %724 = vmatpush1.msra.mxu0 %v723
    %725 = vmatprep.subr.mxu0 0.0
    %v726 = vand.u32 %v92, 4294901760
    %v727 = vsub.f32 %v92, %v726
    %v728 = vand.u32 %v727, 4294901760
    %729 = vmatpush1.msra.mxu0 %v728
    %730 = vmatprep.subr.mxu0 0.0
    %v731 = vand.u32 %v93, 4294901760
    %v732 = vsub.f32 %v93, %v731
    %v733 = vand.u32 %v732, 4294901760
    %734 = vmatpush1.msra.mxu0 %v733
    %735 = vmatprep.subr.mxu0 0.0
    %v736 = vand.u32 %v94, 4294901760
    %v737 = vsub.f32 %v94, %v736
    %v738 = vand.u32 %v737, 4294901760
    %739 = vmatpush1.msra.mxu0 %v738
    %740 = vmatprep.subr.mxu0 0.0
    %v741 = vand.u32 %v95, 4294901760
    %v742 = vsub.f32 %v95, %v741
    %v743 = vand.u32 %v742, 4294901760
    %744 = vmatpush1.msra.mxu0 %v743
    %745 = vmatprep.subr.mxu0 0.0
    %v746 = vand.u32 %v96, 4294901760
    %v747 = vsub.f32 %v96, %v746
    %v748 = vand.u32 %v747, 4294901760
    %749 = vmatpush1.msra.mxu0 %v748
    %750 = vmatprep.subr.mxu0 0.0
    %v751 = vand.u32 %v97, 4294901760
    %v752 = vsub.f32 %v97, %v751
    %v753 = vand.u32 %v752, 4294901760
    %754 = vmatpush1.msra.mxu0 %v753
    %755 = vmatprep.subr.mxu0 0.0
    %v756 = vand.u32 %v98, 4294901760
    %v757 = vsub.f32 %v98, %v756
    %v758 = vand.u32 %v757, 4294901760
    %759 = vmatpush1.msra.mxu0 %v758
    %760 = vmatprep.subr.mxu0 0.0
    %v761 = vand.u32 %v99, 4294901760
    %v762 = vsub.f32 %v99, %v761
    %v763 = vand.u32 %v762, 4294901760
    %764 = vmatpush1.msra.mxu0 %v763
    %765 = vmatprep.subr.mxu0 0.0
    %v766 = vand.u32 %v100, 4294901760
    %v767 = vsub.f32 %v100, %v766
    %v768 = vand.u32 %v767, 4294901760
    %769 = vmatpush1.msra.mxu0 %v768
    %770 = vmatprep.subr.mxu0 0.0
    %v771 = vand.u32 %v101, 4294901760
    %v772 = vsub.f32 %v101, %v771
    %v773 = vand.u32 %v772, 4294901760
    %774 = vmatpush1.msra.mxu0 %v773
    %775 = vmatprep.subr.mxu0 0.0
    %v776 = vand.u32 %v102, 4294901760
    %v777 = vsub.f32 %v102, %v776
    %v778 = vand.u32 %v777, 4294901760
    %779 = vmatpush1.msra.mxu0 %v778
    %780 = vmatprep.subr.mxu0 0.0
    %v781 = vand.u32 %v103, 4294901760
    %v782 = vsub.f32 %v103, %v781
    %v783 = vand.u32 %v782, 4294901760
    %784 = vmatpush1.msra.mxu0 %v783
    %785 = vmatprep.subr.mxu0 0.0
    %v786 = vand.u32 %v104, 4294901760
    %v787 = vsub.f32 %v104, %v786
    %v788 = vand.u32 %v787, 4294901760
    %789 = vmatpush1.msra.mxu0 %v788
    %790 = vmatprep.subr.mxu0 0.0
    %v791 = vand.u32 %v105, 4294901760
    %v792 = vsub.f32 %v105, %v791
    %v793 = vand.u32 %v792, 4294901760
    %794 = vmatpush1.msra.mxu0 %v793
    %795 = vmatprep.subr.mxu0 0.0
    %v796 = vand.u32 %v106, 4294901760
    %v797 = vsub.f32 %v106, %v796
    %v798 = vand.u32 %v797, 4294901760
    %799 = vmatpush1.msra.mxu0 %v798
    %800 = vmatprep.subr.mxu0 0.0
    %v801 = vand.u32 %v107, 4294901760
    %v802 = vsub.f32 %v107, %v801
    %v803 = vand.u32 %v802, 4294901760
    %804 = vmatpush1.msra.mxu0 %v803
    %805 = vmatprep.subr.mxu0 0.0
    %v806 = vand.u32 %v108, 4294901760
    %v807 = vsub.f32 %v108, %v806
    %v808 = vand.u32 %v807, 4294901760
    %809 = vmatpush1.msra.mxu0 %v808
    %810 = vmatprep.subr.mxu0 0.0
    %v811 = vand.u32 %v109, 4294901760
    %v812 = vsub.f32 %v109, %v811
    %v813 = vand.u32 %v812, 4294901760
    %814 = vmatpush1.msra.mxu0 %v813
    %815 = vmatprep.subr.mxu0 0.0
    %v816 = vand.u32 %v110, 4294901760
    %v817 = vsub.f32 %v110, %v816
    %v818 = vand.u32 %v817, 4294901760
    %819 = vmatpush1.msra.mxu0 %v818
    %820 = vmatprep.subr.mxu0 0.0
    %v821 = vand.u32 %v111, 4294901760
    %v822 = vsub.f32 %v111, %v821
    %v823 = vand.u32 %v822, 4294901760
    %824 = vmatpush1.msra.mxu0 %v823
    %825 = vmatprep.subr.mxu0 0.0
    %v826 = vand.u32 %v112, 4294901760
    %v827 = vsub.f32 %v112, %v826
    %v828 = vand.u32 %v827, 4294901760
    %829 = vmatpush1.msra.mxu0 %v828
    %830 = vmatprep.subr.mxu0 0.0
    %v831 = vand.u32 %v113, 4294901760
    %v832 = vsub.f32 %v113, %v831
    %v833 = vand.u32 %v832, 4294901760
    %834 = vmatpush1.msra.mxu0 %v833
    %835 = vmatprep.subr.mxu0 0.0
    %v836 = vand.u32 %v114, 4294901760
    %v837 = vsub.f32 %v114, %v836
    %v838 = vand.u32 %v837, 4294901760
    %839 = vmatpush1.msra.mxu0 %v838
    %840 = vmatprep.subr.mxu0 0.0
    %v841 = vand.u32 %v115, 4294901760
    %v842 = vsub.f32 %v115, %v841
    %v843 = vand.u32 %v842, 4294901760
    %844 = vmatpush1.msra.mxu0 %v843
    %845 = vmatprep.subr.mxu0 0.0
    %v846 = vand.u32 %v116, 4294901760
    %v847 = vsub.f32 %v116, %v846
    %v848 = vand.u32 %v847, 4294901760
    %849 = vmatpush1.msra.mxu0 %v848
    %850 = vmatprep.subr.mxu0 0.0
    %v851 = vand.u32 %v117, 4294901760
    %v852 = vsub.f32 %v117, %v851
    %v853 = vand.u32 %v852, 4294901760
    %854 = vmatpush1.msra.mxu0 %v853
    %855 = vmatprep.subr.mxu0 0.0
    %v856 = vand.u32 %v118, 4294901760
    %v857 = vsub.f32 %v118, %v856
    %v858 = vand.u32 %v857, 4294901760
    %859 = vmatpush1.msra.mxu0 %v858
    %860 = vmatprep.subr.mxu0 0.0
    %v861 = vand.u32 %v119, 4294901760
    %v862 = vsub.f32 %v119, %v861
    %v863 = vand.u32 %v862, 4294901760
    %864 = vmatpush1.msra.mxu0 %v863
    %865 = vmatprep.subr.mxu0 0.0
    %v866 = vand.u32 %v120, 4294901760
    %v867 = vsub.f32 %v120, %v866
    %v868 = vand.u32 %v867, 4294901760
    %869 = vmatpush1.msra.mxu0 %v868
    %870 = vmatprep.subr.mxu0 0.0
    %v871 = vand.u32 %v121, 4294901760
    %v872 = vsub.f32 %v121, %v871
    %v873 = vand.u32 %v872, 4294901760
    %874 = vmatpush1.msra.mxu0 %v873
    %875 = vmatprep.subr.mxu0 0.0
    %v876 = vand.u32 %v122, 4294901760
    %v877 = vsub.f32 %v122, %v876
    %v878 = vand.u32 %v877, 4294901760
    %879 = vmatpush1.msra.mxu0 %v878
    %v880 = vand.u32 %v90, 4294901760
    %881 = vmatprep.mubr.f32.mxu0 %v880
    %v882 = vand.u32 %v89, 4294901760
    %883 = vmatmul.mubr.f32.gmra.mrb[0].mxu0 %v882
    %v884 = vpop.f32.mrb[0].mxu0
    %v885 = vadd.f32 %v717, %v884
    %v886 = vpop.f32.mrb[0].mxu0
    %887 = vdwg.mxu0
    %888 = vmatprep.subr.mxu0 0.0
    %v889 = vand.u32 %v91, 4294901760
    %890 = vmatpush1.msra.mxu0 %v889
    %891 = vmatprep.subr.mxu0 0.0
    %v892 = vand.u32 %v92, 4294901760
    %893 = vmatpush1.msra.mxu0 %v892
    %894 = vmatprep.subr.mxu0 0.0
    %v895 = vand.u32 %v93, 4294901760
    %896 = vmatpush1.msra.mxu0 %v895
    %897 = vmatprep.subr.mxu0 0.0
    %v898 = vand.u32 %v94, 4294901760
    %899 = vmatpush1.msra.mxu0 %v898
    %900 = vmatprep.subr.mxu0 0.0
    %v901 = vand.u32 %v95, 4294901760
    %902 = vmatpush1.msra.mxu0 %v901
    %903 = vmatprep.subr.mxu0 0.0
    %v904 = vand.u32 %v96, 4294901760
    %905 = vmatpush1.msra.mxu0 %v904
    %906 = vmatprep.subr.mxu0 0.0
    %v907 = vand.u32 %v97, 4294901760
    %908 = vmatpush1.msra.mxu0 %v907
    %909 = vmatprep.subr.mxu0 0.0
    %v910 = vand.u32 %v98, 4294901760
    %911 = vmatpush1.msra.mxu0 %v910
    %912 = vmatprep.subr.mxu0 0.0
    %v913 = vand.u32 %v99, 4294901760
    %914 = vmatpush1.msra.mxu0 %v913
    %915 = vmatprep.subr.mxu0 0.0
    %v916 = vand.u32 %v100, 4294901760
    %917 = vmatpush1.msra.mxu0 %v916
    %918 = vmatprep.subr.mxu0 0.0
    %v919 = vand.u32 %v101, 4294901760
    %920 = vmatpush1.msra.mxu0 %v919
    %921 = vmatprep.subr.mxu0 0.0
    %v922 = vand.u32 %v102, 4294901760
    %923 = vmatpush1.msra.mxu0 %v922
    %924 = vmatprep.subr.mxu0 0.0
    %v925 = vand.u32 %v103, 4294901760
    %926 = vmatpush1.msra.mxu0 %v925
    %927 = vmatprep.subr.mxu0 0.0
    %v928 = vand.u32 %v104, 4294901760
    %929 = vmatpush1.msra.mxu0 %v928
    %930 = vmatprep.subr.mxu0 0.0
    %v931 = vand.u32 %v105, 4294901760
    %932 = vmatpush1.msra.mxu0 %v931
    %933 = vmatprep.subr.mxu0 0.0
    %v934 = vand.u32 %v106, 4294901760
    %935 = vmatpush1.msra.mxu0 %v934
    %936 = vmatprep.subr.mxu0 0.0
    %v937 = vand.u32 %v107, 4294901760
    %938 = vmatpush1.msra.mxu0 %v937
    %939 = vmatprep.subr.mxu0 0.0
    %v940 = vand.u32 %v108, 4294901760
    %941 = vmatpush1.msra.mxu0 %v940
    %942 = vmatprep.subr.mxu0 0.0
    %v943 = vand.u32 %v109, 4294901760
    %944 = vmatpush1.msra.mxu0 %v943
    %945 = vmatprep.subr.mxu0 0.0
    %v946 = vand.u32 %v110, 4294901760
    %947 = vmatpush1.msra.mxu0 %v946
    %948 = vmatprep.subr.mxu0 0.0
    %v949 = vand.u32 %v111, 4294901760
    %950 = vmatpush1.msra.mxu0 %v949
    %951 = vmatprep.subr.mxu0 0.0
    %v952 = vand.u32 %v112, 4294901760
    %953 = vmatpush1.msra.mxu0 %v952
    %954 = vmatprep.subr.mxu0 0.0
    %v955 = vand.u32 %v113, 4294901760
    %956 = vmatpush1.msra.mxu0 %v955
    %957 = vmatprep.subr.mxu0 0.0
    %v958 = vand.u32 %v114, 4294901760
    %959 = vmatpush1.msra.mxu0 %v958
    %960 = vmatprep.subr.mxu0 0.0
    %v961 = vand.u32 %v115, 4294901760
    %962 = vmatpush1.msra.mxu0 %v961
    %963 = vmatprep.subr.mxu0 0.0
    %v964 = vand.u32 %v116, 4294901760
    %965 = vmatpush1.msra.mxu0 %v964
    %966 = vmatprep.subr.mxu0 0.0
    %v967 = vand.u32 %v117, 4294901760
    %968 = vmatpush1.msra.mxu0 %v967
    %969 = vmatprep.subr.mxu0 0.0
    %v970 = vand.u32 %v118, 4294901760
    %971 = vmatpush1.msra.mxu0 %v970
    %972 = vmatprep.subr.mxu0 0.0
    %v973 = vand.u32 %v119, 4294901760
    %974 = vmatpush1.msra.mxu0 %v973
    %975 = vmatprep.subr.mxu0 0.0
    %v976 = vand.u32 %v120, 4294901760
    %977 = vmatpush1.msra.mxu0 %v976
    %978 = vmatprep.subr.mxu0 0.0
    %v979 = vand.u32 %v121, 4294901760
    %980 = vmatpush1.msra.mxu0 %v979
    %981 = vmatprep.subr.mxu0 0.0
    %v982 = vand.u32 %v122, 4294901760
    %983 = vmatpush1.msra.mxu0 %v982
    %v984 = vand.u32 %v90, 4294901760
    %985 = vmatprep.mubr.f32.mxu0 %v984
    %v986 = vand.u32 %v89, 4294901760
    %987 = vmatmul.mubr.f32.gmra.mrb[0].mxu0 %v986
    %v988 = vpop.f32.mrb[0].mxu0
    %v989 = vadd.f32 %v885, %v988
    %v990 = vpop.f32.mrb[0].mxu0
    %991 = vdwg.mxu0
    %v992 = vlaneseq
    %v993 = vand.u32 %v992, 127
    %vm994 = vcmp.lt.s32.totalorder %v993, 3
    %v995 = vsel %vm994, %v989, -inf
    %996 = vmax.xlane.f32.xlu0 %v995
    %v997 = vpop.xlane.xlu0 %996
    %v998 = vsub.f32 %v995, %v997
    %v999 = vmul.f32 %v998, 1.442695
    %v1000 = vpow.pop %v999
    %1001 = vadd.xlane.f32.xlu0 %v1000
    %v1002 = vpop.xlane.xlu0 %1001
    %v1003 = vrcp.pop %v1002
    %v1004 = vmul.f32 %v1002, %v1003
    %v1005 = vsub.f32 2.0, %v1004
    %v1006 = vmul.f32 %v1003, %v1005
    %v1007 = vmul.f32 %v1000, %v1006
    %vm1008 = vcmask 23552
    %1009 = vst.msk [vmem:[%s5] sm:$0xff] %vm1008, %v1007
    // Predicated region
    $region26: #{policy_forward.1} parent=1 // pred_check
      _
    $region27: #{policy_forward.1} parent=1 // pred_check_branch
      %1011 = sbr.rel (0) target = $region29
    $region28: #{policy_forward.1} parent=1 // pred_region
      _
    $region29: #{policy_forward.1} parent=1 // pred_fallthru
      _
    // Predicated region
    $region30: #{policy_forward.1} parent=1 // pred_check
      _
    $region31: #{policy_forward.1} parent=1 // pred_check_branch
      %1013 = sbr.rel (0) target = $region33
    $region32: #{policy_forward.1} parent=1 // pred_region
      _
    $region33: #{policy_forward.1} parent=1 // pred_fallthru
      _
    %1014 = vsyncpa [#allocation3], 1

</llo_original>
